<compile_context>
chip_gen: v7x
topology: tpu7x:2x2x1
jax: 0.10.0
libtpu: 0.0.40
codegen_flags: <defaults>
</compile_context>

<pallas_src>
import jax
import jax.numpy as jnp
from jax.experimental import pallas as pl
from jax.experimental.pallas import tpu as pltpu


# ---------------------------------------------------------------------------
# Kernels
# ---------------------------------------------------------------------------


def _masked_kv_tiles(k, v, kk, tk, sk, mask_tail):
    """Zero K/V rows whose global Sk index >= sk (emitted only when needed)."""
    if not mask_tail:
        return k, v
    kidx = jax.lax.broadcasted_iota(jnp.int32, (k.shape[1], 1), 0) + kk * tk
    keep = kidx < sk
    # Zero BOTH k and v so garbage (possibly NaN/Inf) out-of-bounds values can
    # never reach a valid output row via 0 * NaN.
    k = jnp.where(keep, k, jnp.zeros_like(k))
    v = jnp.where(keep, v, jnp.zeros_like(v))
    return k, v


def _make_qkv_kernel(*, tk, sk, mask_tail, acc_is_output):
    """Standard (q k^T) v bracketing with a resident accumulator over Sk."""

    def kernel(q_ref, k_ref, v_ref, o_ref, *scratch):
        acc_ref = o_ref if acc_is_output else scratch[0]
        kk = pl.program_id(2)

        q = q_ref[...]
        k, v = _masked_kv_tiles(k_ref[...], v_ref[...], kk, tk, sk, mask_tail)

        # scores = q @ k^T, contracting over the head dim: the K tile is fed to
        # the MXU in its natural (Sk, D) layout -- no XLU transpose.
        scores = jnp.einsum("bqd,bkd->bqk", q, k,
                            preferred_element_type=jnp.float32)
        # Match PyTorch chained-matmul numerics: attn carried in the input
        # dtype (a no-op cast for f32 inputs); output accumulated in f32.
        part = jnp.einsum("bqk,bkd->bqd", scores.astype(v.dtype), v,
                          preferred_element_type=jnp.float32)

        @pl.when(kk == 0)
        def _first():
            acc_ref[...] = part

        @pl.when(kk > 0)
        def _accumulate():
            acc_ref[...] += part

        if not acc_is_output:
            @pl.when(kk == pl.num_programs(2) - 1)
            def _writeback():
                o_ref[...] = acc_ref[...].astype(o_ref.dtype)

    return kernel


def _make_kv_kernel(*, tk, sk, mask_tail):
    """kv[b] = sum_k k[b, k, :] (x) v[b, k, :]  (reassociated path, pass 1)."""

    def kernel(k_ref, v_ref, kv_ref):
        kk = pl.program_id(1)
        k, v = _masked_kv_tiles(k_ref[...], v_ref[...], kk, tk, sk, mask_tail)
        part = jnp.einsum("bkd,bke->bde", k, v,
                          preferred_element_type=jnp.float32)

        @pl.when(kk == 0)
        def _first():
            kv_ref[...] = part

        @pl.when(kk > 0)
        def _accumulate():
            kv_ref[...] += part

    return kernel


def _apply_kv_kernel(q_ref, kv_ref, o_ref):
    """out = q @ kv  (reassociated path, pass 2)."""
    o_ref[...] = jnp.einsum(
        "bqd,bde->bqe", q_ref[...].astype(jnp.float32), kv_ref[...],
        preferred_element_type=jnp.float32).astype(o_ref.dtype)


# ---------------------------------------------------------------------------
# Wrapper
# ---------------------------------------------------------------------------


def _pick_tile(size, cap):
    # Full-extent blocks are always layout-legal; otherwise `cap` is a multiple
    # of 256 (>= the packed sublane for every dtype) and partial tail blocks
    # are handled in-kernel / by discarded OOB output writes.
    return size if size <= cap else cap


def _clamp_vmem_limit(estimate_bytes):
    # Headroom over the estimate, never below the 32 MiB scoped default and
    # never above 48 MiB so it stays comfortably inside v7x's 64 MiB physical.
    return int(min(max(estimate_bytes + (8 << 20), 32 << 20), 48 << 20))


def scaled_dot_product_attention(q, k, v, *, tq=512, tk=1024, reassociate=False):
    """q: [B, H, Sq, D], k: [B, H, Sk, D], v: [B, H, Sk, Dv] -> [B, H, Sq, Dv].

    reassociate=False (default) reproduces PyTorch's (q @ k^T) @ v bracketing.
    reassociate=True computes q @ (k^T @ v) -- mathematically identical (there
    is no softmax) and far cheaper for long sequences, but a different f32
    summation order, hence opt-in.
    """
    B, H, Sq, D = q.shape
    _, _, Sk, Dk = k.shape
    _, _, Skv, Dv = v.shape
    assert Dk == D and Skv == Sk

    BH = B * H
    q3 = q.reshape(BH, Sq, D)
    k3 = k.reshape(BH, Sk, D)
    v3 = v.reshape(BH, Sk, Dv)
    itemsize = jnp.dtype(q.dtype).itemsize

    TQ = _pick_tile(Sq, tq)
    TK = _pick_tile(Sk, tk)
    nq = pl.cdiv(Sq, TQ)
    nk = pl.cdiv(Sk, TK)
    mask_tail = (Sk % TK) != 0

    # Pack several (batch, head) slices per step when whole heads are tiny, so
    # each step moves a few MiB and amortizes the ~0.35 us per-step overhead.
    hblk = 1
    if nq == 1 and nk == 1 and BH > 1:
        per_head = (Sq * D + Sk * D + Sk * Dv + Sq * Dv) * itemsize
        hblk = max(1, min(BH, (4 << 20) // max(per_head, 1)))
        # Keep >= 2 parallel grid steps so both v7x TensorCores get work.
        hblk = min(hblk, pl.cdiv(BH, 2))
    nb = pl.cdiv(BH, hblk)

    if reassociate:
        # ---- pass 1: kv[b] = k[b]^T @ v[b], reduced over the Sk grid axis ----
        kv_step = 2 * itemsize * hblk * (TK * D + TK * Dv) + 2 * 4 * hblk * D * Dv
        kv = pl.pallas_call(
            _make_kv_kernel(tk=TK, sk=Sk, mask_tail=mask_tail),
            out_shape=jax.ShapeDtypeStruct((BH, D, Dv), jnp.float32),
            grid_spec=pltpu.PrefetchScalarGridSpec(
                num_scalar_prefetch=0,
                grid=(nb, nk),
                in_specs=[
                    pl.BlockSpec((hblk, TK, D), lambda b, kk: (b, kk, 0)),
                    pl.BlockSpec((hblk, TK, Dv), lambda b, kk: (b, kk, 0)),
                ],
                out_specs=pl.BlockSpec((hblk, D, Dv), lambda b, kk: (b, 0, 0)),
            ),
            compiler_params=pltpu.CompilerParams(
                dimension_semantics=("parallel", "arbitrary"),
                vmem_limit_bytes=_clamp_vmem_limit(kv_step),
            ),
            cost_estimate=pl.CostEstimate(
                flops=2 * BH * Sk * D * Dv, transcendentals=0,
                bytes_accessed=(k3.size + v3.size) * itemsize + BH * D * Dv * 4),
        )(k3, v3)

        # ---- pass 2: out = q @ kv ----
        ap_step = 2 * itemsize * hblk * (TQ * D + TQ * Dv) + 2 * 4 * hblk * D * Dv
        out3 = pl.pallas_call(
            _apply_kv_kernel,
            out_shape=jax.ShapeDtypeStruct((BH, Sq, Dv), q.dtype),
            grid_spec=pltpu.PrefetchScalarGridSpec(
                num_scalar_prefetch=0,
                grid=(nb, nq),
                in_specs=[
                    pl.BlockSpec((hblk, TQ, D), lambda b, i: (b, i, 0)),
                    pl.BlockSpec((hblk, D, Dv), lambda b, i: (b, 0, 0)),
                ],
                out_specs=pl.BlockSpec((hblk, TQ, Dv), lambda b, i: (b, i, 0)),
            ),
            compiler_params=pltpu.CompilerParams(
                dimension_semantics=("parallel", "parallel"),
                vmem_limit_bytes=_clamp_vmem_limit(ap_step),
            ),
            cost_estimate=pl.CostEstimate(
                flops=2 * BH * Sq * D * Dv, transcendentals=0,
                bytes_accessed=(q3.size + BH * Sq * Dv) * itemsize
                + BH * D * Dv * 4),
        )(q3, kv)
        return out3.reshape(B, H, Sq, Dv)

    # ---- default path: exact (q k^T) v bracketing ----
    acc_is_output = q.dtype == jnp.float32
    scratch_shapes = ([] if acc_is_output
                      else [pltpu.VMEM((hblk, TQ, Dv), jnp.float32)])
    step_bytes = (2 * itemsize * hblk * (TQ * D + TK * D + TK * Dv + TQ * Dv)
                  + 4 * hblk * TQ * TK
                  + (0 if acc_is_output else 4 * hblk * TQ * Dv))

    flops = 2 * BH * Sq * Sk * D + 2 * BH * Sq * Sk * Dv
    bytes_accessed = (q3.size + k3.size + v3.size + BH * Sq * Dv) * itemsize

    out3 = pl.pallas_call(
        _make_qkv_kernel(tk=TK, sk=Sk, mask_tail=mask_tail,
                         acc_is_output=acc_is_output),
        out_shape=jax.ShapeDtypeStruct((BH, Sq, Dv), q.dtype),
        grid_spec=pltpu.PrefetchScalarGridSpec(
            num_scalar_prefetch=0,
            grid=(nb, nq, nk),
            in_specs=[
                pl.BlockSpec((hblk, TQ, D), lambda b, i, kk: (b, i, 0)),
                pl.BlockSpec((hblk, TK, D), lambda b, i, kk: (b, kk, 0)),
                pl.BlockSpec((hblk, TK, Dv), lambda b, i, kk: (b, kk, 0)),
            ],
            # Same output block index across the Sk axis -> stays resident.
            out_specs=pl.BlockSpec((hblk, TQ, Dv), lambda b, i, kk: (b, i, 0)),
            scratch_shapes=scratch_shapes,
        ),
        compiler_params=pltpu.CompilerParams(
            dimension_semantics=("parallel", "parallel", "arbitrary"),
            vmem_limit_bytes=_clamp_vmem_limit(step_bytes),
        ),
        cost_estimate=pl.CostEstimate(
            flops=flops, transcendentals=0, bytes_accessed=bytes_accessed),
    )(q3, k3, v3)
    return out3.reshape(B, H, Sq, Dv)


if __name__ == "__main__":
    def _reference(q, k, v):
        attn = jnp.einsum("bhqd,bhkd->bhqk", q, k)
        return jnp.einsum("bhqk,bhkd->bhqd", attn, v)

    keys = jax.random.split(jax.random.PRNGKey(0), 6)

    # Primary small shape (matches the module's [B, H, S, D] layout).
    B, H, Sq, Sk, D = 2, 2, 8, 8, 32
    q = jax.random.normal(keys[0], (B, H, Sq, D), dtype=jnp.float32)
    k = jax.random.normal(keys[1], (B, H, Sk, D), dtype=jnp.float32)
    v = jax.random.normal(keys[2], (B, H, Sk, D), dtype=jnp.float32)

    ref = _reference(q, k, v)
    out = jax.block_until_ready(scaled_dot_product_attention(q, k, v))
    assert out.shape == ref.shape
    assert jnp.allclose(out, ref, atol=1e-4, rtol=1e-4)

    out_r = jax.block_until_ready(
        scaled_dot_product_attention(q, k, v, reassociate=True))
    assert jnp.allclose(out_r, ref, atol=1e-4, rtol=1e-4)

    # Ragged shape: exercises partial Q blocks and the masked K/V tail
    # (non-divisible Sk) without any wrapper-side padding.
    B2, H2, Sq2, Sk2, D2 = 1, 2, 24, 40, 32
    q2 = jax.random.normal(keys[3], (B2, H2, Sq2, D2), dtype=jnp.float32)
    k2 = jax.random.normal(keys[4], (B2, H2, Sk2, D2), dtype=jnp.float32)
    v2 = jax.random.normal(keys[5], (B2, H2, Sk2, D2), dtype=jnp.float32)

    ref2 = _reference(q2, k2, v2)
    out2 = jax.block_until_ready(
        scaled_dot_product_attention(q2, k2, v2, tq=16, tk=16))
    assert jnp.allclose(out2, ref2, atol=1e-4, rtol=1e-4)
    out2_r = jax.block_until_ready(
        scaled_dot_product_attention(q2, k2, v2, tq=16, tk=16, reassociate=True))
    assert jnp.allclose(out2_r, ref2, atol=1e-4, rtol=1e-4)

    print("KERNEL_OK")
</pallas_src>

<mosaic_0001>
module attributes {stable_mosaic.version = 11 : i64} {
  func.func @kernel(%arg0: i32, %arg1: i32, %arg2: i32, %arg3: memref<2x8x32xf32, #tpu.memory_space<vmem>>, %arg4: memref<2x8x32xf32, #tpu.memory_space<vmem>>, %arg5: memref<2x8x32xf32, #tpu.memory_space<vmem>>, %arg6: memref<2x8x32xf32, #tpu.memory_space<vmem>>) attributes {dimension_semantics = [#tpu.dimension_semantics<parallel>, #tpu.dimension_semantics<parallel>, #tpu.dimension_semantics<arbitrary>], iteration_bounds = array<i64: 2, 1, 1>, scalar_prefetch = 0 : i64, scratch_operands = 0 : i64, tpu.core_type = #tpu.core_type<tc>, window_params = [{transform_indices = @transform_0, window_bounds = array<i64: 2, 8, 32>}, {transform_indices = @transform_1, window_bounds = array<i64: 2, 8, 32>}, {transform_indices = @transform_2, window_bounds = array<i64: 2, 8, 32>}, {transform_indices = @transform_3, window_bounds = array<i64: 2, 8, 32>}]} {
    %c0 = arith.constant 0 : index
    %c0_0 = arith.constant 0 : index
    %c0_1 = arith.constant 0 : index
    %0 = vector.load %arg3[%c0, %c0_0, %c0_1] : memref<2x8x32xf32, #tpu.memory_space<vmem>>, vector<2x8x32xf32>
    %c0_2 = arith.constant 0 : index
    %c0_3 = arith.constant 0 : index
    %c0_4 = arith.constant 0 : index
    %1 = vector.load %arg4[%c0_2, %c0_3, %c0_4] : memref<2x8x32xf32, #tpu.memory_space<vmem>>, vector<2x8x32xf32>
    %c0_5 = arith.constant 0 : index
    %c0_6 = arith.constant 0 : index
    %c0_7 = arith.constant 0 : index
    %2 = vector.load %arg5[%c0_5, %c0_6, %c0_7] : memref<2x8x32xf32, #tpu.memory_space<vmem>>, vector<2x8x32xf32>
    "tpu.trace_start"() <{level = 10 : i32, message = "bqd,bkd->bqk"}> : () -> ()
    %cst = arith.constant dense<0.000000e+00> : vector<2x8x8xf32>
    %3 = tpu.matmul %0, %1, %cst {dimension_numbers = #tpu.dot_dimension_numbers<[2], [2], [1], [1], [0, 0, 0, 1, 1, 1], [0], [0]>} : vector<2x8x32xf32>, vector<2x8x32xf32>, vector<2x8x8xf32> -> vector<2x8x8xf32>
    "tpu.trace_stop"() : () -> ()
    "tpu.trace_start"() <{level = 10 : i32, message = "bqk,bkd->bqd"}> : () -> ()
    %cst_8 = arith.constant dense<0.000000e+00> : vector<2x8x32xf32>
    %4 = tpu.matmul %3, %2, %cst_8 {dimension_numbers = #tpu.dot_dimension_numbers<[2], [1], [1], [2], [0, 0, 0, 1, 1, 2], [0], [0]>} : vector<2x8x8xf32>, vector<2x8x32xf32>, vector<2x8x32xf32> -> vector<2x8x32xf32>
    %c0_i32 = arith.constant 0 : i32
    "tpu.trace_stop"() : () -> ()
    %5 = arith.cmpi eq, %arg2, %c0_i32 : i32
    %6 = arith.extui %5 : i1 to i32
    %c0_i32_9 = arith.constant 0 : i32
    %7 = arith.cmpi ne, %6, %c0_i32_9 : i32
    scf.if %7 {
      %c0_12 = arith.constant 0 : index
      %c0_13 = arith.constant 0 : index
      %c0_14 = arith.constant 0 : index
      %11 = vector.load %arg6[%c0_12, %c0_13, %c0_14] : memref<2x8x32xf32, #tpu.memory_space<vmem>>, vector<2x8x32xf32>
      tpu.vector_store %arg6[%c0_12, %c0_13, %c0_14], %4 {strides = array<i32>} : memref<2x8x32xf32, #tpu.memory_space<vmem>>, vector<2x8x32xf32>,
    } else {
    }
    %c0_i32_10 = arith.constant 0 : i32
    %8 = arith.cmpi sgt, %arg2, %c0_i32_10 : i32
    %9 = arith.extui %8 : i1 to i32
    %c0_i32_11 = arith.constant 0 : i32
    %10 = arith.cmpi ne, %9, %c0_i32_11 : i32
    scf.if %10 {
      %c0_12 = arith.constant 0 : index
      %c0_13 = arith.constant 0 : index
      %c0_14 = arith.constant 0 : index
      %11 = vector.load %arg6[%c0_12, %c0_13, %c0_14] : memref<2x8x32xf32, #tpu.memory_space<vmem>>, vector<2x8x32xf32>
      %12 = arith.addf %11, %4 : vector<2x8x32xf32>
      %c0_15 = arith.constant 0 : index
      %c0_16 = arith.constant 0 : index
      %c0_17 = arith.constant 0 : index
      %13 = vector.load %arg6[%c0_15, %c0_16, %c0_17] : memref<2x8x32xf32, #tpu.memory_space<vmem>>, vector<2x8x32xf32>
      tpu.vector_store %arg6[%c0_15, %c0_16, %c0_17], %12 {strides = array<i32>} : memref<2x8x32xf32, #tpu.memory_space<vmem>>, vector<2x8x32xf32>,
    } else {
    }
    return
  }
  func.func @transform_0(%arg0: i32, %arg1: i32, %arg2: i32) -> (i32, i32, i32) {
    %c0_i32 = arith.constant 0 : i32
    %c0_i32_0 = arith.constant 0 : i32
    return %arg0, %arg1, %c0_i32 : i32, i32, i32
  }
  func.func @transform_1(%arg0: i32, %arg1: i32, %arg2: i32) -> (i32, i32, i32) {
    %c0_i32 = arith.constant 0 : i32
    %c0_i32_0 = arith.constant 0 : i32
    return %arg0, %arg2, %c0_i32 : i32, i32, i32
  }
  func.func @transform_2(%arg0: i32, %arg1: i32, %arg2: i32) -> (i32, i32, i32) {
    %c0_i32 = arith.constant 0 : i32
    %c0_i32_0 = arith.constant 0 : i32
    return %arg0, %arg2, %c0_i32 : i32, i32, i32
  }
  func.func @transform_3(%arg0: i32, %arg1: i32, %arg2: i32) -> (i32, i32, i32) {
    %c0_i32 = arith.constant 0 : i32
    %c0_i32_0 = arith.constant 0 : i32
    return %arg0, %arg1, %c0_i32 : i32, i32, i32
  }
}

</mosaic_0001>

<llo_original>
// kernel: tpu_custom_call.1
$region0: #{tpu_custom_call.1}
  #allocation0 [shape = 'u32[]', space=smem, size = 0x4, offset = 0x4, fixed_abs, tag = 'smem constant byte address 0x4 - core index']
  #allocation1 [shape = 'u32[144,128]{1,0:T(1,128)}', space=vmem, size = 0x12000, scoped, tag = 'internal scratch']
  %s0 = inlined_call_operand.hbm [shape: f32[4,8,32], index: 0, kind: input, shape index: {}]
  %s1 = inlined_call_operand.hbm [shape: f32[4,8,32], index: 1, kind: input, shape index: {}]
  %s2 = inlined_call_operand.hbm [shape: f32[4,8,32], index: 2, kind: input, shape index: {}]
  %s3 = inlined_call_operand.hbm [shape: f32[4,8,32], index: 3, kind: output, shape index: {}]
  %s4 = sld [smem:[#allocation0]]
  $region65: #{tpu_custom_call.1} parent=0
    _
  %s6 = ssub.s32 1, %s4
  %s7 = scalar_select 0, %s6, %s4
  $region1: #{tpu_custom_call.1} parent=0
    #allocation2 [shape = 'u8[16384]{0}', space=vmem, size = 0x4000, scoped, tag = 'input window, operand 0']
    #allocation3 [shape = 's32[2]{0}', space=sflag, size = 0x8, scoped, tag = 'scoped memory for tpu_custom_call.1']
    #allocation4 [shape = 's32[2]{0}', space=sflag, size = 0x8, scoped, tag = 'scoped memory for tpu_custom_call.1']
    #allocation5 [shape = 'u8[16384]{0}', space=vmem, size = 0x4000, scoped, tag = 'input window, operand 1']
    #allocation6 [shape = 's32[2]{0}', space=sflag, size = 0x8, scoped, tag = 'scoped memory for tpu_custom_call.1']
    #allocation7 [shape = 'u8[16384]{0}', space=vmem, size = 0x4000, scoped, tag = 'input window, operand 2']
    #allocation8 [shape = 'u8[16384]{0}', space=vmem, size = 0x4000, scoped, tag = 'output window, operand 0']
    %8 = vsyncpa [#allocation3], 0
    %s9 = scalar_lea.sflag [#allocation3], 1
    %10 = vsyncpa %s9, 0
    %11 = vsyncpa [#allocation6], 0
    %s12 = scalar_lea.sflag [#allocation6], 1
    %13 = vsyncpa %s12, 0
    %14 = vsyncpa [#allocation4], 0
    %s15 = scalar_lea.sflag [#allocation4], 1
    %16 = vsyncpa %s15, 0
    loop: start=0, step=1, limit=4
    $region2: #{tpu_custom_call.1} parent=1 // loop_pre_header
      _
    $region3: #{tpu_custom_call.1} parent=1 // loop_header
      %s18 = sphi 0, %s22
      %p19 = scmp.ge.s32.totalorder %s18, 4
      %s25 = sphi 0, %s44
      %s26 = sphi 0, %s40
      %s27 = sphi 0, %s36
      %s28 = sphi 0, %s25
      %s29 = sphi 0, %s26
      %s30 = sphi 0, %s27
      %s31 = sphi 0, %s28
      %s32 = sphi 0, %s29
      %s33 = sphi 0, %s30
      %s49 = sphi 0, %s51
      %s52 = sphi 0, %s49
      %s53 = sphi 0, %s52
      %s69 = sphi 0, %s53
      %s77 = sphi 0, %s79
      %s80 = sphi 0, %s77
      %s81 = sphi 0, %s80
      %s97 = sphi 0, %s81
      %s105 = sphi 0, %s107
      %s108 = sphi 0, %s105
      %s109 = sphi 0, %s108
      %s125 = sphi 0, %s109
      %s133 = sphi 0, %s135
      %s136 = sphi 0, %s133
      %s137 = sphi 0, %s136
      %s153 = sphi 0, %s137
    $region4: #{tpu_custom_call.1} parent=1 // loop_header_branch
      %21 = sbr.rel (%p19) target = $region8
    $region5: #{tpu_custom_call.1} parent=1 // loop_body
      %s23 = ssub.s32 %s18, 1
      %s24 = ssub.s32 %s18, 2
      %s34 = sadd.s32 1, %s27
      %p35 = scmp.ge.s32.totalorder %s34, 1
      %s36 = scalar_select %p35, 0, %s34
      %s37 = sadd.s32 1, %s26
      %s38 = scalar_select %p35, %s37, %s26
      %p39 = scmp.ge.s32.totalorder %s38, 1
      %s40 = scalar_select %p39, 0, %s38
      %s41 = sadd.s32 1, %s25
      %s42 = scalar_select %p39, %s41, %s25
      %p43 = scmp.ge.s32.totalorder %s42, 2
      %s44 = scalar_select %p43, 0, %s42
      %s45 = ssub.s32 %s25, %s44
      %s46 = ssub.s32 %s26, %s40
      %s47 = sor.u32 %s45, %s46
      %p48 = scmp.eq.s32.totalorder %s47, 0
      %s50 = sadd.s32 %s49, 1
      %s51 = scalar_select %p48, %s49, %s50
      %p54 = pneg %p48
      %p55 = scmp.eq.s32.totalorder %s18, 1
      %p56 = por %p54, %p55
      %p57 = scmp.ne.s32.totalorder %s49, %s52
      %p58 = scmp.eq.s32.totalorder %s18, 0
      %p59 = por %p57, %p58
      %p60 = scmp.ne.s32.totalorder %s49, %s52
      %p61 = scmp.eq.s32.totalorder %s23, 1
      %p62 = por %p60, %p61
      %p63 = scmp.ne.s32.totalorder %s52, %s53
      %p64 = scmp.eq.s32.totalorder %s23, 0
      %p65 = por %p63, %p64
      %p66 = scmp.ne.s32.totalorder %s52, %s53
      %p67 = scmp.eq.s32.totalorder %s24, 1
      %p68 = por %p66, %p67
      %p70 = scmp.ne.s32.totalorder %s53, %s69
      %p71 = scmp.eq.s32.totalorder %s24, 0
      %p72 = por %p70, %p71
      %s73 = ssub.s32 %s25, %s44
      %s74 = ssub.s32 %s27, %s36
      %s75 = sor.u32 %s73, %s74
      %p76 = scmp.eq.s32.totalorder %s75, 0
      %s78 = sadd.s32 %s77, 1
      %s79 = scalar_select %p76, %s77, %s78
      %p82 = pneg %p76
      %p83 = scmp.eq.s32.totalorder %s18, 1
      %p84 = por %p82, %p83
      %p85 = scmp.ne.s32.totalorder %s77, %s80
      %p86 = scmp.eq.s32.totalorder %s18, 0
      %p87 = por %p85, %p86
      %p88 = scmp.ne.s32.totalorder %s77, %s80
      %p89 = scmp.eq.s32.totalorder %s23, 1
      %p90 = por %p88, %p89
      %p91 = scmp.ne.s32.totalorder %s80, %s81
      %p92 = scmp.eq.s32.totalorder %s23, 0
      %p93 = por %p91, %p92
      %p94 = scmp.ne.s32.totalorder %s80, %s81
      %p95 = scmp.eq.s32.totalorder %s24, 1
      %p96 = por %p94, %p95
      %p98 = scmp.ne.s32.totalorder %s81, %s97
      %p99 = scmp.eq.s32.totalorder %s24, 0
      %p100 = por %p98, %p99
      %s101 = ssub.s32 %s25, %s44
      %s102 = ssub.s32 %s27, %s36
      %s103 = sor.u32 %s101, %s102
      %p104 = scmp.eq.s32.totalorder %s103, 0
      %s106 = sadd.s32 %s105, 1
      %s107 = scalar_select %p104, %s105, %s106
      %p110 = pneg %p104
      %p111 = scmp.eq.s32.totalorder %s18, 1
      %p112 = por %p110, %p111
      %p113 = scmp.ne.s32.totalorder %s105, %s108
      %p114 = scmp.eq.s32.totalorder %s18, 0
      %p115 = por %p113, %p114
      %p116 = scmp.ne.s32.totalorder %s105, %s108
      %p117 = scmp.eq.s32.totalorder %s23, 1
      %p118 = por %p116, %p117
      %p119 = scmp.ne.s32.totalorder %s108, %s109
      %p120 = scmp.eq.s32.totalorder %s23, 0
      %p121 = por %p119, %p120
      %p122 = scmp.ne.s32.totalorder %s108, %s109
      %p123 = scmp.eq.s32.totalorder %s24, 1
      %p124 = por %p122, %p123
      %p126 = scmp.ne.s32.totalorder %s109, %s125
      %p127 = scmp.eq.s32.totalorder %s24, 0
      %p128 = por %p126, %p127
      %s129 = ssub.s32 %s25, %s44
      %s130 = ssub.s32 %s26, %s40
      %s131 = sor.u32 %s129, %s130
      %p132 = scmp.eq.s32.totalorder %s131, 0
      %s134 = sadd.s32 %s133, 1
      %s135 = scalar_select %p132, %s133, %s134
      %p138 = pneg %p132
      %p139 = scmp.eq.s32.totalorder %s18, 1
      %p140 = por %p138, %p139
      %p141 = scmp.ne.s32.totalorder %s133, %s136
      %p142 = scmp.eq.s32.totalorder %s18, 0
      %p143 = por %p141, %p142
      %p144 = scmp.ne.s32.totalorder %s133, %s136
      %p145 = scmp.eq.s32.totalorder %s23, 1
      %p146 = por %p144, %p145
      %p147 = scmp.ne.s32.totalorder %s136, %s137
      %p148 = scmp.eq.s32.totalorder %s23, 0
      %p149 = por %p147, %p148
      %p150 = scmp.ne.s32.totalorder %s136, %s137
      %p151 = scmp.eq.s32.totalorder %s24, 1
      %p152 = por %p150, %p151
      %p154 = scmp.ne.s32.totalorder %s137, %s153
      %p155 = scmp.eq.s32.totalorder %s24, 0
      %p156 = por %p154, %p155
      %p157 = scmp.le.s32.totalorder 1, %s18
      %p158 = scmp.lt.s32.totalorder %s18, 3
      %p159 = pnand %p157, %p158
      %p160 = pneg %p159
      // Predicated region
      $region9: #{tpu_custom_call.1} parent=5 // pred_check
        _
      $region10: #{tpu_custom_call.1} parent=5 // pred_check_branch
        %162 = sbr.rel (%p159) target = $region12
      $region11: #{tpu_custom_call.1} parent=5 // pred_region
        %s163 = ssub.s32 %s18, 1
      $region12: #{tpu_custom_call.1} parent=5 // pred_fallthru
        _
      %p164 = scmp.lt.s32.totalorder %s18, 2
      // Predicated region
      $region13: #{tpu_custom_call.1} parent=5 // pred_check
        %p165 = pneg %p164
      $region14: #{tpu_custom_call.1} parent=5 // pred_check_branch
        %167 = sbr.rel (%p165) target = $region16
      $region15: #{tpu_custom_call.1} parent=5 // pred_region
        // Predicated region
        $region17: #{tpu_custom_call.1} parent=15 // pred_check
          %p168 = pneg %p59
        $region18: #{tpu_custom_call.1} parent=15 // pred_check_branch
          %170 = sbr.rel (%p168) target = $region20
        $region19: #{tpu_custom_call.1} parent=15 // pred_region
          %s171 = sand.u32 %s49, 1
          %s172 = scalar_lea.sflag [#allocation3], %s171
          %s173 = sand.u32 %s49, 1
          %s174 = smul.addr %s173, 16
          %s175 = scalar_lea.vmem [#allocation2], %s174
          %s176 = smul.u32 2, %s25
          %s178 = ssub.s32 256, 256
          %179 = vsyncadd %s172, %s178
          %s180 = sadd.s32 %s26, %s176
          %s181 = smul.addr %s180, 128
          %s182 = scalar_lea.hbm %s0, %s181
          %s183 = sshll.u32 %s175, 4
          %s184 = int_to_ptr.vmem [resolvable:$true] %s183
          %189 = dma.hbm_to_vmem [thread:$0]  %s182, 256, %s184, %s172, 128, 128, 8
        $region20: #{tpu_custom_call.1} parent=15 // pred_fallthru
          _
        // Predicated region
        $region21: #{tpu_custom_call.1} parent=15 // pred_check
          %p190 = pneg %p87
        $region22: #{tpu_custom_call.1} parent=15 // pred_check_branch
          %192 = sbr.rel (%p190) target = $region24
        $region23: #{tpu_custom_call.1} parent=15 // pred_region
          %s193 = sand.u32 %s18, 1
          %s194 = scalar_lea.sflag [#allocation6], %s193
          %s195 = sand.u32 %s77, 1
          %s196 = smul.addr %s195, 16
          %s197 = scalar_lea.vmem [#allocation5], %s196
          %s198 = smul.u32 2, %s25
          %s200 = ssub.s32 256, 256
          %201 = vsyncadd %s194, %s200
          %s202 = sadd.s32 %s27, %s198
          %s203 = smul.addr %s202, 128
          %s204 = scalar_lea.hbm %s1, %s203
          %s205 = sshll.u32 %s197, 4
          %s206 = int_to_ptr.vmem [resolvable:$true] %s205
          %211 = dma.hbm_to_vmem [thread:$0]  %s204, 256, %s206, %s194, 128, 128, 8
        $region24: #{tpu_custom_call.1} parent=15 // pred_fallthru
          _
        // Predicated region
        $region25: #{tpu_custom_call.1} parent=15 // pred_check
          %p212 = pneg %p115
        $region26: #{tpu_custom_call.1} parent=15 // pred_check_branch
          %214 = sbr.rel (%p212) target = $region28
        $region27: #{tpu_custom_call.1} parent=15 // pred_region
          %s215 = sand.u32 %s18, 1
          %s216 = scalar_lea.sflag [#allocation6], %s215
          %s217 = sand.u32 %s105, 1
          %s218 = smul.addr %s217, 16
          %s219 = scalar_lea.vmem [#allocation7], %s218
          %s220 = smul.u32 2, %s25
          %s222 = ssub.s32 256, 256
          %223 = vsyncadd %s216, %s222
          %s224 = sadd.s32 %s27, %s220
          %s225 = smul.addr %s224, 128
          %s226 = scalar_lea.hbm %s2, %s225
          %s227 = sshll.u32 %s219, 4
          %s228 = int_to_ptr.vmem [resolvable:$true] %s227
          %233 = dma.hbm_to_vmem [thread:$0]  %s226, 256, %s228, %s216, 128, 128, 8
        $region28: #{tpu_custom_call.1} parent=15 // pred_fallthru
          _
      $region16: #{tpu_custom_call.1} parent=5 // pred_fallthru
        _
      %p234 = scmp.le.s32.totalorder 1, %s18
      %p235 = scmp.lt.s32.totalorder %s18, 3
      %p236 = pnand %p234, %p235
      %p237 = pneg %p236
      // Predicated region
      $region29: #{tpu_custom_call.1} parent=5 // pred_check
        _
      $region30: #{tpu_custom_call.1} parent=5 // pred_check_branch
        %239 = sbr.rel (%p236) target = $region32
      $region31: #{tpu_custom_call.1} parent=5 // pred_region
        %s240 = ssub.s32 %s18, 1
        %s241 = sand.u32 %s52, 1
        %s242 = scalar_lea.sflag [#allocation3], %s241
        %s243 = sand.u32 %s52, 1
        %s244 = smul.addr %s243, 16
        %s245 = scalar_lea.vmem [#allocation2], %s244
        // Predicated region
        $region33: #{tpu_custom_call.1} parent=31 // pred_check
          %p246 = pneg %p65
        $region34: #{tpu_custom_call.1} parent=31 // pred_check_branch
          %248 = sbr.rel (%p246) target = $region36
        $region35: #{tpu_custom_call.1} parent=31 // pred_region
          %249 = dma.done %s242, 256
        $region36: #{tpu_custom_call.1} parent=31 // pred_fallthru
          _
        %s250 = sand.u32 %s23, 1
        %s251 = scalar_lea.sflag [#allocation6], %s250
        %s252 = sand.u32 %s80, 1
        %s253 = smul.addr %s252, 16
        %s254 = scalar_lea.vmem [#allocation5], %s253
        // Predicated region
        $region37: #{tpu_custom_call.1} parent=31 // pred_check
          %p255 = pneg %p93
        $region38: #{tpu_custom_call.1} parent=31 // pred_check_branch
          %257 = sbr.rel (%p255) target = $region40
        $region39: #{tpu_custom_call.1} parent=31 // pred_region
          %258 = dma.done %s251, 256
        $region40: #{tpu_custom_call.1} parent=31 // pred_fallthru
          _
        %s259 = sand.u32 %s23, 1
        %s260 = scalar_lea.sflag [#allocation6], %s259
        %s261 = sand.u32 %s108, 1
        %s262 = smul.addr %s261, 16
        %s263 = scalar_lea.vmem [#allocation7], %s262
        // Predicated region
        $region41: #{tpu_custom_call.1} parent=31 // pred_check
          %p264 = pneg %p121
        $region42: #{tpu_custom_call.1} parent=31 // pred_check_branch
          %266 = sbr.rel (%p264) target = $region44
        $region43: #{tpu_custom_call.1} parent=31 // pred_region
          %267 = dma.done %s260, 256
        $region44: #{tpu_custom_call.1} parent=31 // pred_fallthru
          _
        %s268 = sand.u32 %s52, 1
        %s269 = scalar_lea.sflag [#allocation3], %s268
        %s270 = sand.u32 %s52, 1
        %s271 = smul.addr %s270, 16
        %s272 = scalar_lea.vmem [#allocation2], %s271
        %p273 = pneg %p65
        %p274 = pneg %p62
        %s275 = sand.u32 %s23, 1
        %s276 = scalar_lea.sflag [#allocation6], %s275
        %s277 = sand.u32 %s80, 1
        %s278 = smul.addr %s277, 16
        %s279 = scalar_lea.vmem [#allocation5], %s278
        %p280 = pneg %p93
        %p281 = pneg %p90
        %s282 = sand.u32 %s23, 1
        %s283 = scalar_lea.sflag [#allocation6], %s282
        %s284 = sand.u32 %s108, 1
        %s285 = smul.addr %s284, 16
        %s286 = scalar_lea.vmem [#allocation7], %s285
        %p287 = pneg %p121
        %p288 = pneg %p118
        %p289 = pneg %p149
        %p290 = pneg %p146
        %s291 = sand.u32 %s136, 1
        %s292 = scalar_lea.sflag [#allocation4], %s291
        %s293 = sand.u32 %s136, 1
        %s294 = smul.addr %s293, 16
        %s295 = scalar_lea.vmem [#allocation8], %s294
        %s296 = smul.u32 2, %s28
        %s297 = smul.u32 2, %s28
        %s298 = smul.u32 2, %s28
        %s299 = smul.u32 2, %s28
        %v300 = vld [vmem:[%s245] sm:$0xff]
        %v301 = vld [vmem:[%s245 + $0x8] sm:$0xff]
        %v302 = vld [vmem:[%s254] sm:$0xff]
        %v303 = vld [vmem:[%s254 + $0x8] sm:$0xff]
        %v304 = vld [vmem:[%s263] sm:$0xff]
        %v305 = vld [vmem:[%s263 + $0x8] sm:$0xff]
        %vm306 = vcmask 261120
        %v308 = vsel %vm306, %v300, 0
        %v311 = vsel %vm306, %v302, 0
        %313 = vmatprep.subr.mxu0 0.0
        %314 = vmatpush1.xpose.msra.mxu0 %v311
        %315 = vmatprep.subr.mxu0 0.0
        %316 = vmatpush1.xpose.msra.mxu0 0.0
        %317 = vmatprep.subr.mxu0 0.0
        %318 = vmatpush1.xpose.msra.mxu0 0.0
        %319 = vmatprep.subr.mxu0 0.0
        %320 = vmatpush1.xpose.msra.mxu0 0.0
        %321 = vmatprep.subr.mxu0 0.0
        %322 = vmatpush1.xpose.msra.mxu0 0.0
        %323 = vmatprep.subr.mxu0 0.0
        %324 = vmatpush1.xpose.msra.mxu0 0.0
        %325 = vmatprep.subr.mxu0 0.0
        %326 = vmatpush1.xpose.msra.mxu0 0.0
        %327 = vmatprep.subr.mxu0 0.0
        %328 = vmatpush1.xpose.msra.mxu0 0.0
        %329 = vmatprep.subr.mxu0 0.0
        %330 = vmatpush1.xpose.msra.mxu0 0.0
        %331 = vmatprep.subr.mxu0 0.0
        %332 = vmatpush1.xpose.msra.mxu0 0.0
        %333 = vmatprep.subr.mxu0 0.0
        %334 = vmatpush1.xpose.msra.mxu0 0.0
        %335 = vmatprep.subr.mxu0 0.0
        %336 = vmatpush1.xpose.msra.mxu0 0.0
        %337 = vmatprep.subr.mxu0 0.0
        %338 = vmatpush1.xpose.msra.mxu0 0.0
        %339 = vmatprep.subr.mxu0 0.0
        %340 = vmatpush1.xpose.msra.mxu0 0.0
        %341 = vmatprep.subr.mxu0 0.0
        %342 = vmatpush1.xpose.msra.mxu0 0.0
        %343 = vmatprep.subr.mxu0 0.0
        %344 = vmatpush1.xpose.msra.mxu0 0.0
        %345 = vmatprep.subr.mxu0 0.0
        %346 = vmatpush1.xpose.msra.mxu0 0.0
        %347 = vmatprep.subr.mxu0 0.0
        %348 = vmatpush1.xpose.msra.mxu0 0.0
        %349 = vmatprep.subr.mxu0 0.0
        %350 = vmatpush1.xpose.msra.mxu0 0.0
        %351 = vmatprep.subr.mxu0 0.0
        %352 = vmatpush1.xpose.msra.mxu0 0.0
        %353 = vmatprep.subr.mxu0 0.0
        %354 = vmatpush1.xpose.msra.mxu0 0.0
        %355 = vmatprep.subr.mxu0 0.0
        %356 = vmatpush1.xpose.msra.mxu0 0.0
        %357 = vmatprep.subr.mxu0 0.0
        %358 = vmatpush1.xpose.msra.mxu0 0.0
        %359 = vmatprep.subr.mxu0 0.0
        %360 = vmatpush1.xpose.msra.mxu0 0.0
        %361 = vmatprep.subr.mxu0 0.0
        %362 = vmatpush1.xpose.msra.mxu0 0.0
        %363 = vmatprep.subr.mxu0 0.0
        %364 = vmatpush1.xpose.msra.mxu0 0.0
        %365 = vmatprep.subr.mxu0 0.0
        %366 = vmatpush1.xpose.msra.mxu0 0.0
        %367 = vmatprep.subr.mxu0 0.0
        %368 = vmatpush1.xpose.msra.mxu0 0.0
        %369 = vmatprep.subr.mxu0 0.0
        %370 = vmatpush1.xpose.msra.mxu0 0.0
        %371 = vmatprep.subr.mxu0 0.0
        %372 = vmatpush1.xpose.msra.mxu0 0.0
        %373 = vmatprep.subr.mxu0 0.0
        %374 = vmatpush1.xpose.msra.mxu0 0.0
        %375 = vmatprep.subr.mxu0 0.0
        %376 = vmatpush1.xpose.msra.mxu0 0.0
        %377 = vmatprep.mubr.f32.mxu0 0.0
        %378 = vmatmul.mubr.f32.gmra.mrb[0].mxu0 %v308
        %v379 = vpop.f32.mrb[0].mxu0
        %v380 = vadd.f32 0.0, %v379
        %v381 = vpop.f32.mrb[0].mxu0
        %382 = vdwg.mxu0
        %v384 = vsel %vm306, %v301, 0
        %v387 = vsel %vm306, %v303, 0
        %389 = vmatprep.subr.mxu0 0.0
        %390 = vmatpush1.xpose.msra.mxu0 %v387
        %391 = vmatprep.subr.mxu0 0.0
        %392 = vmatpush1.xpose.msra.mxu0 0.0
        %393 = vmatprep.subr.mxu0 0.0
        %394 = vmatpush1.xpose.msra.mxu0 0.0
        %395 = vmatprep.subr.mxu0 0.0
        %396 = vmatpush1.xpose.msra.mxu0 0.0
        %397 = vmatprep.subr.mxu0 0.0
        %398 = vmatpush1.xpose.msra.mxu0 0.0
        %399 = vmatprep.subr.mxu0 0.0
        %400 = vmatpush1.xpose.msra.mxu0 0.0
        %401 = vmatprep.subr.mxu0 0.0
        %402 = vmatpush1.xpose.msra.mxu0 0.0
        %403 = vmatprep.subr.mxu0 0.0
        %404 = vmatpush1.xpose.msra.mxu0 0.0
        %405 = vmatprep.subr.mxu0 0.0
        %406 = vmatpush1.xpose.msra.mxu0 0.0
        %407 = vmatprep.subr.mxu0 0.0
        %408 = vmatpush1.xpose.msra.mxu0 0.0
        %409 = vmatprep.subr.mxu0 0.0
        %410 = vmatpush1.xpose.msra.mxu0 0.0
        %411 = vmatprep.subr.mxu0 0.0
        %412 = vmatpush1.xpose.msra.mxu0 0.0
        %413 = vmatprep.subr.mxu0 0.0
        %414 = vmatpush1.xpose.msra.mxu0 0.0
        %415 = vmatprep.subr.mxu0 0.0
        %416 = vmatpush1.xpose.msra.mxu0 0.0
        %417 = vmatprep.subr.mxu0 0.0
        %418 = vmatpush1.xpose.msra.mxu0 0.0
        %419 = vmatprep.subr.mxu0 0.0
        %420 = vmatpush1.xpose.msra.mxu0 0.0
        %421 = vmatprep.subr.mxu0 0.0
        %422 = vmatpush1.xpose.msra.mxu0 0.0
        %423 = vmatprep.subr.mxu0 0.0
        %424 = vmatpush1.xpose.msra.mxu0 0.0
        %425 = vmatprep.subr.mxu0 0.0
        %426 = vmatpush1.xpose.msra.mxu0 0.0
        %427 = vmatprep.subr.mxu0 0.0
        %428 = vmatpush1.xpose.msra.mxu0 0.0
        %429 = vmatprep.subr.mxu0 0.0
        %430 = vmatpush1.xpose.msra.mxu0 0.0
        %431 = vmatprep.subr.mxu0 0.0
        %432 = vmatpush1.xpose.msra.mxu0 0.0
        %433 = vmatprep.subr.mxu0 0.0
        %434 = vmatpush1.xpose.msra.mxu0 0.0
        %435 = vmatprep.subr.mxu0 0.0
        %436 = vmatpush1.xpose.msra.mxu0 0.0
        %437 = vmatprep.subr.mxu0 0.0
        %438 = vmatpush1.xpose.msra.mxu0 0.0
        %439 = vmatprep.subr.mxu0 0.0
        %440 = vmatpush1.xpose.msra.mxu0 0.0
        %441 = vmatprep.subr.mxu0 0.0
        %442 = vmatpush1.xpose.msra.mxu0 0.0
        %443 = vmatprep.subr.mxu0 0.0
        %444 = vmatpush1.xpose.msra.mxu0 0.0
        %445 = vmatprep.subr.mxu0 0.0
        %446 = vmatpush1.xpose.msra.mxu0 0.0
        %447 = vmatprep.subr.mxu0 0.0
        %448 = vmatpush1.xpose.msra.mxu0 0.0
        %449 = vmatprep.subr.mxu0 0.0
        %450 = vmatpush1.xpose.msra.mxu0 0.0
        %451 = vmatprep.subr.mxu0 0.0
        %452 = vmatpush1.xpose.msra.mxu0 0.0
        %453 = vmatprep.mubr.f32.mxu0 0.0
        %454 = vmatmul.mubr.f32.gmra.mrb[0].mxu0 %v384
        %v455 = vpop.f32.mrb[0].mxu0
        %v456 = vadd.f32 0.0, %v455
        %v457 = vpop.f32.mrb[0].mxu0
        %458 = vdwg.mxu0
        %vm459 = vcmask 64512
        %v461 = vsel %vm459, %v380, 0
        %463 = vmatprep.subr.mxu0 0.0
        %464 = vmatpush1.msra.mxu0 %v304
        %465 = vmatprep.subr.mxu0 0.0
        %466 = vmatpush1.msra.mxu0 0.0
        %467 = vmatprep.subr.mxu0 0.0
        %468 = vmatpush1.msra.mxu0 0.0
        %469 = vmatprep.subr.mxu0 0.0
        %470 = vmatpush1.msra.mxu0 0.0
        %471 = vmatprep.subr.mxu0 0.0
        %472 = vmatpush1.msra.mxu0 0.0
        %473 = vmatprep.subr.mxu0 0.0
        %474 = vmatpush1.msra.mxu0 0.0
        %475 = vmatprep.subr.mxu0 0.0
        %476 = vmatpush1.msra.mxu0 0.0
        %477 = vmatprep.subr.mxu0 0.0
        %478 = vmatpush1.msra.mxu0 0.0
        %479 = vmatprep.subr.mxu0 0.0
        %480 = vmatpush1.msra.mxu0 0.0
        %481 = vmatprep.subr.mxu0 0.0
        %482 = vmatpush1.msra.mxu0 0.0
        %483 = vmatprep.subr.mxu0 0.0
        %484 = vmatpush1.msra.mxu0 0.0
        %485 = vmatprep.subr.mxu0 0.0
        %486 = vmatpush1.msra.mxu0 0.0
        %487 = vmatprep.subr.mxu0 0.0
        %488 = vmatpush1.msra.mxu0 0.0
        %489 = vmatprep.subr.mxu0 0.0
        %490 = vmatpush1.msra.mxu0 0.0
        %491 = vmatprep.subr.mxu0 0.0
        %492 = vmatpush1.msra.mxu0 0.0
        %493 = vmatprep.subr.mxu0 0.0
        %494 = vmatpush1.msra.mxu0 0.0
        %495 = vmatprep.subr.mxu0 0.0
        %496 = vmatpush1.msra.mxu0 0.0
        %497 = vmatprep.subr.mxu0 0.0
        %498 = vmatpush1.msra.mxu0 0.0
        %499 = vmatprep.subr.mxu0 0.0
        %500 = vmatpush1.msra.mxu0 0.0
        %501 = vmatprep.subr.mxu0 0.0
        %502 = vmatpush1.msra.mxu0 0.0
        %503 = vmatprep.subr.mxu0 0.0
        %504 = vmatpush1.msra.mxu0 0.0
        %505 = vmatprep.subr.mxu0 0.0
        %506 = vmatpush1.msra.mxu0 0.0
        %507 = vmatprep.subr.mxu0 0.0
        %508 = vmatpush1.msra.mxu0 0.0
        %509 = vmatprep.subr.mxu0 0.0
        %510 = vmatpush1.msra.mxu0 0.0
        %511 = vmatprep.subr.mxu0 0.0
        %512 = vmatpush1.msra.mxu0 0.0
        %513 = vmatprep.subr.mxu0 0.0
        %514 = vmatpush1.msra.mxu0 0.0
        %515 = vmatprep.subr.mxu0 0.0
        %516 = vmatpush1.msra.mxu0 0.0
        %517 = vmatprep.subr.mxu0 0.0
        %518 = vmatpush1.msra.mxu0 0.0
        %519 = vmatprep.subr.mxu0 0.0
        %520 = vmatpush1.msra.mxu0 0.0
        %521 = vmatprep.subr.mxu0 0.0
        %522 = vmatpush1.msra.mxu0 0.0
        %523 = vmatprep.subr.mxu0 0.0
        %524 = vmatpush1.msra.mxu0 0.0
        %525 = vmatprep.subr.mxu0 0.0
        %526 = vmatpush1.msra.mxu0 0.0
        %527 = vmatprep.mubr.f32.mxu0 0.0
        %528 = vmatmul.mubr.f32.gmra.mrb[0].mxu0 %v461
        %v529 = vpop.f32.mrb[0].mxu0
        %v530 = vadd.f32 0.0, %v529
        %v531 = vpop.f32.mrb[0].mxu0
        %532 = vdwg.mxu0
        %v534 = vsel %vm459, %v456, 0
        %536 = vmatprep.subr.mxu0 0.0
        %537 = vmatpush1.msra.mxu0 %v305
        %538 = vmatprep.subr.mxu0 0.0
        %539 = vmatpush1.msra.mxu0 0.0
        %540 = vmatprep.subr.mxu0 0.0
        %541 = vmatpush1.msra.mxu0 0.0
        %542 = vmatprep.subr.mxu0 0.0
        %543 = vmatpush1.msra.mxu0 0.0
        %544 = vmatprep.subr.mxu0 0.0
        %545 = vmatpush1.msra.mxu0 0.0
        %546 = vmatprep.subr.mxu0 0.0
        %547 = vmatpush1.msra.mxu0 0.0
        %548 = vmatprep.subr.mxu0 0.0
        %549 = vmatpush1.msra.mxu0 0.0
        %550 = vmatprep.subr.mxu0 0.0
        %551 = vmatpush1.msra.mxu0 0.0
        %552 = vmatprep.subr.mxu0 0.0
        %553 = vmatpush1.msra.mxu0 0.0
        %554 = vmatprep.subr.mxu0 0.0
        %555 = vmatpush1.msra.mxu0 0.0
        %556 = vmatprep.subr.mxu0 0.0
        %557 = vmatpush1.msra.mxu0 0.0
        %558 = vmatprep.subr.mxu0 0.0
        %559 = vmatpush1.msra.mxu0 0.0
        %560 = vmatprep.subr.mxu0 0.0
        %561 = vmatpush1.msra.mxu0 0.0
        %562 = vmatprep.subr.mxu0 0.0
        %563 = vmatpush1.msra.mxu0 0.0
        %564 = vmatprep.subr.mxu0 0.0
        %565 = vmatpush1.msra.mxu0 0.0
        %566 = vmatprep.subr.mxu0 0.0
        %567 = vmatpush1.msra.mxu0 0.0
        %568 = vmatprep.subr.mxu0 0.0
        %569 = vmatpush1.msra.mxu0 0.0
        %570 = vmatprep.subr.mxu0 0.0
        %571 = vmatpush1.msra.mxu0 0.0
        %572 = vmatprep.subr.mxu0 0.0
        %573 = vmatpush1.msra.mxu0 0.0
        %574 = vmatprep.subr.mxu0 0.0
        %575 = vmatpush1.msra.mxu0 0.0
        %576 = vmatprep.subr.mxu0 0.0
        %577 = vmatpush1.msra.mxu0 0.0
        %578 = vmatprep.subr.mxu0 0.0
        %579 = vmatpush1.msra.mxu0 0.0
        %580 = vmatprep.subr.mxu0 0.0
        %581 = vmatpush1.msra.mxu0 0.0
        %582 = vmatprep.subr.mxu0 0.0
        %583 = vmatpush1.msra.mxu0 0.0
        %584 = vmatprep.subr.mxu0 0.0
        %585 = vmatpush1.msra.mxu0 0.0
        %586 = vmatprep.subr.mxu0 0.0
        %587 = vmatpush1.msra.mxu0 0.0
        %588 = vmatprep.subr.mxu0 0.0
        %589 = vmatpush1.msra.mxu0 0.0
        %590 = vmatprep.subr.mxu0 0.0
        %591 = vmatpush1.msra.mxu0 0.0
        %592 = vmatprep.subr.mxu0 0.0
        %593 = vmatpush1.msra.mxu0 0.0
        %594 = vmatprep.subr.mxu0 0.0
        %595 = vmatpush1.msra.mxu0 0.0
        %596 = vmatprep.subr.mxu0 0.0
        %597 = vmatpush1.msra.mxu0 0.0
        %598 = vmatprep.subr.mxu0 0.0
        %599 = vmatpush1.msra.mxu0 0.0
        %600 = vmatprep.mubr.f32.mxu0 0.0
        %601 = vmatmul.mubr.f32.gmra.mrb[0].mxu0 %v534
        %v602 = vpop.f32.mrb[0].mxu0
        %v603 = vadd.f32 0.0, %v602
        %v604 = vpop.f32.mrb[0].mxu0
        %605 = vdwg.mxu0
        %p606 = scmp.eq.s32.totalorder %s30, 0
        // Predicated region
        $region45: #{tpu_custom_call.1} parent=31 // pred_check
          %p607 = pneg %p606
        $region46: #{tpu_custom_call.1} parent=31 // pred_check_branch
          %609 = sbr.rel (%p607) target = $region48
        $region47: #{tpu_custom_call.1} parent=31 // pred_region
          %610 = vst.msk [vmem:[%s295] sm:$0xff] %vm306, %v530
          %611 = vst.msk [vmem:[%s295 + $0x8] sm:$0xff] %vm306, %v603
        $region48: #{tpu_custom_call.1} parent=31 // pred_fallthru
          _
        %p612 = scmp.gt.s32.totalorder %s30, 0
        // Predicated region
        $region49: #{tpu_custom_call.1} parent=31 // pred_check
          %p613 = pneg %p612
        $region50: #{tpu_custom_call.1} parent=31 // pred_check_branch
          %615 = sbr.rel (%p613) target = $region52
        $region51: #{tpu_custom_call.1} parent=31 // pred_region
          %v616 = vld [vmem:[%s295] sm:$0xff]
          %v617 = vld [vmem:[%s295 + $0x8] sm:$0xff]
          %v618 = vadd.f32 %v616, %v530
          %v619 = vadd.f32 %v617, %v603
          %620 = vst.msk [vmem:[%s295] sm:$0xff] %vm306, %v618
          %621 = vst.msk [vmem:[%s295 + $0x8] sm:$0xff] %vm306, %v619
        $region52: #{tpu_custom_call.1} parent=31 // pred_fallthru
          _
        %s622 = sand.u32 %s136, 1
        %s623 = scalar_lea.sflag [#allocation4], %s622
        %s624 = sand.u32 %s136, 1
        %s625 = smul.addr %s624, 16
        %s626 = scalar_lea.vmem [#allocation8], %s625
        // Predicated region
        $region53: #{tpu_custom_call.1} parent=31 // pred_check
          %p627 = pneg %p146
        $region54: #{tpu_custom_call.1} parent=31 // pred_check_branch
          %629 = sbr.rel (%p627) target = $region56
        $region55: #{tpu_custom_call.1} parent=31 // pred_region
          %s630 = smul.u32 2, %s28
          %s632 = ssub.s32 256, 256
          %633 = vsyncadd %s623, %s632
          %s634 = sadd.s32 %s29, %s630
          %s635 = smul.addr %s634, 128
          %s636 = scalar_lea.hbm %s3, %s635
          %s637 = sshll.u32 %s626, 4
          %s638 = int_to_ptr.vmem [resolvable:$true] %s637
          %643 = dma.vmem_to_hbm [thread:$0]  %s638, 256, %s636, %s623, 128, 128, 8
        $region56: #{tpu_custom_call.1} parent=31 // pred_fallthru
          _
      $region32: #{tpu_custom_call.1} parent=5 // pred_fallthru
        _
      %p644 = scmp.le.s32.totalorder 2, %s18
      // Predicated region
      $region57: #{tpu_custom_call.1} parent=5 // pred_check
        %p645 = pneg %p644
      $region58: #{tpu_custom_call.1} parent=5 // pred_check_branch
        %647 = sbr.rel (%p645) target = $region60
      $region59: #{tpu_custom_call.1} parent=5 // pred_region
        %s648 = ssub.s32 %s18, 2
        // Predicated region
        $region61: #{tpu_custom_call.1} parent=59 // pred_check
          %p649 = pneg %p152
        $region62: #{tpu_custom_call.1} parent=59 // pred_check_branch
          %651 = sbr.rel (%p649) target = $region64
        $region63: #{tpu_custom_call.1} parent=59 // pred_region
          %s652 = sand.u32 %s137, 1
          %s653 = scalar_lea.sflag [#allocation4], %s652
          %s654 = sand.u32 %s137, 1
          %s655 = smul.addr %s654, 16
          %s656 = scalar_lea.vmem [#allocation8], %s655
          %657 = dma.done %s653, 256
        $region64: #{tpu_custom_call.1} parent=59 // pred_fallthru
          _
      $region60: #{tpu_custom_call.1} parent=5 // pred_fallthru
        _
    $region6: #{tpu_custom_call.1} parent=1 // loop_footer
      %s22 = sadd.s32 1, %s18
    $region7: #{tpu_custom_call.1} parent=1 // loop_footer_branch
      %17 = sbr.rel target = $region3
    $region8: #{tpu_custom_call.1} parent=1 // loop_exit
      _
    %658 = vsyncpa [#allocation3], 1
    %s659 = scalar_lea.sflag [#allocation3], 1
    %660 = vsyncpa %s659, 1
    %661 = vsyncpa [#allocation6], 1
    %s662 = scalar_lea.sflag [#allocation6], 1
    %663 = vsyncpa %s662, 1
    %664 = vsyncpa [#allocation4], 1
    %s665 = scalar_lea.sflag [#allocation4], 1
    %666 = vsyncpa %s665, 1

</llo_original>
